<compile_context>
chip_gen: v7x
topology: tpu7x:2x2x1
jax: 0.10.0
libtpu: 0.0.40
codegen_flags: <defaults>
</compile_context>

<pallas_src>
import functools

import jax
import jax.numpy as jnp
from jax.experimental import pallas as pl
from jax.experimental.pallas import tpu as pltpu


def _round_up(x, m):
    return ((x + m - 1) // m) * m


def _score_kernel(x_ref, w_ref, o_ref):
    # x_ref: (tm, D)  activation block (compute dtype, typically bf16)
    # w_ref: (D, tn)  weight column block
    # o_ref: (tm, tn) output block (out dtype, bf16)
    acc = jnp.dot(x_ref[...], w_ref[...], preferred_element_type=jnp.float32)
    o_ref[...] = acc.astype(o_ref.dtype)


def pack_score_weight(weight, compute_dtype=jnp.bfloat16):
    """Repack (K, H, D) -> (D, H*K) once at weight-load time.

    W_flat[d, h*K + k] == weight[k, h, d], so  out_flat = X @ W_flat  and
    out_flat.reshape(B, T, H, K) matches the PyTorch 'bthk' convention.
    """
    k, h, d = weight.shape
    return jnp.transpose(weight, (2, 1, 0)).reshape(d, h * k).astype(compute_dtype)


@functools.partial(
    jax.jit, static_argnames=("num_heads", "out_dtype", "compute_dtype", "tm", "tn")
)
def multi_head_autocasting_score_packed(
    hiddens,
    w_flat,
    *,
    num_heads,
    out_dtype=jnp.bfloat16,
    compute_dtype=jnp.bfloat16,
    tm=256,
    tn=None,
):
    """hiddens: (B, T, D); w_flat: (D, H*K) pre-packed -> (B, T, H, K)."""
    b, t, d = hiddens.shape
    d_w, n = w_flat.shape
    assert d == d_w
    assert n % num_heads == 0
    k = n // num_heads
    m = b * t

    # Row tile: big (default 256, multiple of 16 for bf16 sublane packing) to
    # amortize per-step overhead, but clamped so tiny inputs don't over-pad.
    tm_eff = min(tm, _round_up(m, 16))
    m_pad = _round_up(m, tm_eff)

    # Column tile: lane-dense (multiple of 128); capped at 512 so the (D, tn)
    # weight block double-buffer stays small (fits v7x's 64 MiB VMEM).
    n128 = _round_up(n, 128)
    tn_eff = tn if tn is not None else min(n128, 512)
    tn_eff = _round_up(tn_eff, 128)
    n_pad = _round_up(n, tn_eff)

    # Glue (plain XLA): cast to compute dtype, flatten rows, zero-pad to tiles.
    x = hiddens.astype(compute_dtype).reshape(m, d)
    if m_pad != m:
        x = jnp.pad(x, ((0, m_pad - m), (0, 0)))
    w = w_flat.astype(compute_dtype)
    if n_pad != n:
        w = jnp.pad(w, ((0, 0), (0, n_pad - n)))

    grid = (m_pad // tm_eff, n_pad // tn_eff)

    out_flat = pl.pallas_call(
        _score_kernel,
        out_shape=jax.ShapeDtypeStruct((m_pad, n_pad), out_dtype),
        grid_spec=pltpu.PrefetchScalarGridSpec(
            num_scalar_prefetch=0,
            grid=grid,
            in_specs=[
                pl.BlockSpec((tm_eff, d), lambda i, j: (i, 0)),
                pl.BlockSpec((d, tn_eff), lambda i, j: (0, j)),
            ],
            out_specs=pl.BlockSpec((tm_eff, tn_eff), lambda i, j: (i, j)),
        ),
        compiler_params=pltpu.CompilerParams(
            dimension_semantics=("parallel", "parallel"),
            vmem_limit_bytes=64 * 1024 * 1024,
        ),
    )(x, w)

    # Slice off padding, reshape back to PyTorch's (B, T, H, K).
    return out_flat[:m, :n].reshape(b, t, num_heads, k)


def multi_head_autocasting_score(
    hiddens,
    weight,
    *,
    out_dtype=jnp.bfloat16,
    compute_dtype=jnp.bfloat16,
    tm=256,
    tn=None,
):
    """Convenience wrapper: hiddens (B,T,D); weight (K,H,D) -> (B,T,H,K).

    Note: for inference-style use, call pack_score_weight() once and use
    multi_head_autocasting_score_packed() to avoid re-transposing the weight
    on every call.
    """
    k, h, d = weight.shape
    w_flat = pack_score_weight(weight, compute_dtype)
    return multi_head_autocasting_score_packed(
        hiddens,
        w_flat,
        num_heads=h,
        out_dtype=out_dtype,
        compute_dtype=compute_dtype,
        tm=tm,
        tn=tn,
    )


def make_weight(key, num_labels, num_heads, hidden):
    """Deterministic stand-in for the __init__: stack num_heads row-permuted
    copies of a base Linear weight (num_labels, hidden) along dim=1."""
    k_base, k_perm = jax.random.split(key)
    base = jax.random.normal(k_base, (num_labels, hidden), dtype=jnp.float32) * 0.02
    perms = []
    for i in range(num_heads):
        perm = jax.random.permutation(jax.random.fold_in(k_perm, i), num_labels)
        perms.append(base[perm])
    # stack along dim=1 -> (num_labels, num_heads, hidden)
    return jnp.stack(perms, axis=1)


if __name__ == "__main__":
    B, T, D = 2, 8, 32        # batch, seq, hidden
    K, H = 4, 12              # num labels (Linear out_features), num heads

    key = jax.random.PRNGKey(0)
    k_x, k_w = jax.random.split(key)
    hiddens = jax.random.normal(k_x, (B, T, D), dtype=jnp.float32)
    weight = make_weight(k_w, K, H, D)

    # Pack the weight once (weight-load time), then run the kernel.
    w_flat = pack_score_weight(weight)
    out = multi_head_autocasting_score_packed(hiddens, w_flat, num_heads=H)
    out = jax.block_until_ready(out)

    # Reference check (pure JAX einsum in f32, matching PyTorch cast semantics).
    # Kernel uses bf16 inputs + f32 accumulation, so compare with a bf16-level
    # tolerance.
    ref = jnp.einsum(
        "btd,khd->bthk", hiddens.astype(jnp.float32), weight.astype(jnp.float32)
    ).astype(jnp.bfloat16)
    assert out.shape == (B, T, H, K)
    assert out.dtype == jnp.bfloat16
    assert jnp.allclose(
        out.astype(jnp.float32), ref.astype(jnp.float32), atol=2e-2, rtol=2e-2
    )

    print("KERNEL_OK")
</pallas_src>

<mosaic_0001>
module attributes {stable_mosaic.version = 11 : i64} {
  func.func @_score_kernel(%arg0: i32, %arg1: i32, %arg2: memref<16x32xbf16, #tpu.memory_space<vmem>>, %arg3: memref<32x128xbf16, #tpu.memory_space<vmem>>, %arg4: memref<16x128xbf16, #tpu.memory_space<vmem>>) attributes {dimension_semantics = [#tpu.dimension_semantics<parallel>, #tpu.dimension_semantics<parallel>], iteration_bounds = array<i64: 1, 1>, scalar_prefetch = 0 : i64, scratch_operands = 0 : i64, tpu.core_type = #tpu.core_type<tc>, window_params = [{transform_indices = @transform_0, window_bounds = array<i64: 16, 32>}, {transform_indices = @transform_1, window_bounds = array<i64: 32, 128>}, {transform_indices = @transform_2, window_bounds = array<i64: 16, 128>}]} {
    %c0 = arith.constant 0 : index
    %c0_0 = arith.constant 0 : index
    %0 = vector.load %arg2[%c0, %c0_0] : memref<16x32xbf16, #tpu.memory_space<vmem>>, vector<16x32xbf16>
    %c0_1 = arith.constant 0 : index
    %c0_2 = arith.constant 0 : index
    %1 = vector.load %arg3[%c0_1, %c0_2] : memref<32x128xbf16, #tpu.memory_space<vmem>>, vector<32x128xbf16>
    %cst = arith.constant dense<0.000000e+00> : vector<16x128xf32>
    %2 = tpu.matmul %0, %1, %cst {dimension_numbers = #tpu.dot_dimension_numbers<[1], [0], [0], [1], [0, 0, 1, 1], [], []>} : vector<16x32xbf16>, vector<32x128xbf16>, vector<16x128xf32> -> vector<16x128xf32>
    %3 = arith.truncf %2 : vector<16x128xf32> to vector<16x128xbf16>
    %c0_3 = arith.constant 0 : index
    %c0_4 = arith.constant 0 : index
    %4 = vector.load %arg4[%c0_3, %c0_4] : memref<16x128xbf16, #tpu.memory_space<vmem>>, vector<16x128xbf16>
    tpu.vector_store %arg4[%c0_3, %c0_4], %3 {strides = array<i32>} : memref<16x128xbf16, #tpu.memory_space<vmem>>, vector<16x128xbf16>,
    return
  }
  func.func @transform_0(%arg0: i32, %arg1: i32) -> (i32, i32) {
    %c0_i32 = arith.constant 0 : i32
    %c0_i32_0 = arith.constant 0 : i32
    return %arg0, %c0_i32 : i32, i32
  }
  func.func @transform_1(%arg0: i32, %arg1: i32) -> (i32, i32) {
    %c0_i32 = arith.constant 0 : i32
    %c0_i32_0 = arith.constant 0 : i32
    return %c0_i32, %arg1 : i32, i32
  }
  func.func @transform_2(%arg0: i32, %arg1: i32) -> (i32, i32) {
    %c0_i32 = arith.constant 0 : i32
    return %arg0, %arg1 : i32, i32
  }
}

</mosaic_0001>

<llo_original>
// kernel: multi_head_autocasting_score_packed.1
$region0: #{multi_head_autocasting_score_packed.1}
  #allocation0 [shape = 'u32[]', space=smem, size = 0x4, offset = 0x4, fixed_abs, tag = 'smem constant byte address 0x4 - core index']
  #allocation1 [shape = 'u32[144,128]{1,0:T(1,128)}', space=vmem, size = 0x12000, scoped, tag = 'internal scratch']
  %s0 = inlined_call_operand.hbm [shape: bf16[16,32], index: 0, kind: input, shape index: {}]
  %s1 = inlined_call_operand.hbm [shape: bf16[32,128], index: 1, kind: input, shape index: {}]
  %s2 = inlined_call_operand.hbm [shape: bf16[16,128], index: 2, kind: output, shape index: {}]
  %s3 = sld [smem:[#allocation0]]
  $region26: #{multi_head_autocasting_score_packed.1} parent=0
    _
  %s5 = ssub.s32 1, %s3
  %s6 = scalar_select 0, %s5, %s3
  $region1: #{multi_head_autocasting_score_packed.1} parent=0
    #allocation2 [shape = 'u8[4096]{0}', space=vmem, size = 0x1000, scoped, tag = 'input window, operand 0, single buffered']
    #allocation3 [shape = 's32[1]{0}', space=sflag, size = 0x4, scoped, tag = 'scoped memory for multi_head_autocasting_score_packed.1']
    #allocation4 [shape = 's32[1]{0}', space=sflag, size = 0x4, scoped, tag = 'scoped memory for multi_head_autocasting_score_packed.1']
    #allocation5 [shape = 'u8[8192]{0}', space=vmem, size = 0x2000, scoped, tag = 'input window, operand 1, single buffered']
    #allocation6 [shape = 's32[1]{0}', space=sflag, size = 0x4, scoped, tag = 'scoped memory for multi_head_autocasting_score_packed.1']
    #allocation7 [shape = 'u8[4096]{0}', space=vmem, size = 0x1000, scoped, tag = 'output window, operand 0, single buffered']
    %7 = vsyncpa [#allocation3], 0
    %8 = vsyncpa [#allocation6], 0
    %9 = vsyncpa [#allocation4], 0
    // Predicated region
    $region2: #{multi_head_autocasting_score_packed.1} parent=1 // pred_check
      _
    $region3: #{multi_head_autocasting_score_packed.1} parent=1 // pred_check_branch
      %11 = sbr.rel (0) target = $region5
    $region4: #{multi_head_autocasting_score_packed.1} parent=1 // pred_region
      %s13 = ssub.s32 128, 128
      %14 = vsyncadd [#allocation3], %s13
      %s15 = sshll.u32 [#allocation2], 4
      %s16 = int_to_ptr.vmem [resolvable:$true] %s15
      %21 = dma.hbm_to_vmem [thread:$0]  %s0, 128, %s16, [#allocation3], 64, 64, 4
    $region5: #{multi_head_autocasting_score_packed.1} parent=1 // pred_fallthru
      _
    // Predicated region
    $region6: #{multi_head_autocasting_score_packed.1} parent=1 // pred_check
      _
    $region7: #{multi_head_autocasting_score_packed.1} parent=1 // pred_check_branch
      %23 = sbr.rel (0) target = $region9
    $region8: #{multi_head_autocasting_score_packed.1} parent=1 // pred_region
      %s25 = ssub.s32 256, 256
      %26 = vsyncadd [#allocation6], %s25
      %s27 = sshll.u32 [#allocation5], 4
      %s28 = int_to_ptr.vmem [resolvable:$true] %s27
      %33 = dma.hbm_to_vmem [thread:$0]  %s1, 256, %s28, [#allocation6], 64, 64, 4
    $region9: #{multi_head_autocasting_score_packed.1} parent=1 // pred_fallthru
      _
    // Predicated region
    $region10: #{multi_head_autocasting_score_packed.1} parent=1 // pred_check
      _
    $region11: #{multi_head_autocasting_score_packed.1} parent=1 // pred_check_branch
      %35 = sbr.rel (0) target = $region13
    $region12: #{multi_head_autocasting_score_packed.1} parent=1 // pred_region
      %36 = dma.done [#allocation3], 128
    $region13: #{multi_head_autocasting_score_packed.1} parent=1 // pred_fallthru
      _
    // Predicated region
    $region14: #{multi_head_autocasting_score_packed.1} parent=1 // pred_check
      _
    $region15: #{multi_head_autocasting_score_packed.1} parent=1 // pred_check_branch
      %38 = sbr.rel (0) target = $region17
    $region16: #{multi_head_autocasting_score_packed.1} parent=1 // pred_region
      %39 = dma.done [#allocation6], 256
    $region17: #{multi_head_autocasting_score_packed.1} parent=1 // pred_fallthru
      _
    %v41 = vld [vmem:[#allocation2] sm:$0xf]
    %v42 = vld [vmem:[#allocation2 + $0x4] sm:$0xf]
    %v43 = vld [vmem:[#allocation5] sm:$0xf]
    %v44 = vld [vmem:[#allocation5 + $0x4] sm:$0xf]
    %v45 = vld [vmem:[#allocation5 + $0x8] sm:$0xf]
    %v46 = vld [vmem:[#allocation5 + $0xc] sm:$0xf]
    %v49 = vunpack.c.l.b16 %v41
    %v50 = vunpack.c.l.b16 %v42
    %v51 = vpack.c.b16 %v50, %v49
    %v56 = vunpack.c.l.b16 %v43
    %v57 = vunpack.c.l.b16 %v44
    %v58 = vunpack.c.l.b16 %v45
    %v59 = vunpack.c.l.b16 %v46
    %v60 = vpack.c.b16 %v57, %v56
    %v61 = vpack.c.b16 %v59, %v58
    %vm64 = vcmask 261120
    %v66 = vsel %vm64, %v51, 0
    %68 = vmatprep.subr.bf16.mxu0 0
    %69 = vmatpush1.bf16.msra.mxu0 %v60
    %70 = vmatprep.subr.bf16.mxu0 0
    %71 = vmatpush1.bf16.msra.mxu0 %v61
    %72 = vmatprep.subr.bf16.mxu0 0
    %73 = vmatpush1.bf16.msra.mxu0 0
    %74 = vmatprep.subr.bf16.mxu0 0
    %75 = vmatpush1.bf16.msra.mxu0 0
    %76 = vmatprep.subr.bf16.mxu0 0
    %77 = vmatpush1.bf16.msra.mxu0 0
    %78 = vmatprep.subr.bf16.mxu0 0
    %79 = vmatpush1.bf16.msra.mxu0 0
    %80 = vmatprep.subr.bf16.mxu0 0
    %81 = vmatpush1.bf16.msra.mxu0 0
    %82 = vmatprep.subr.bf16.mxu0 0
    %83 = vmatpush1.bf16.msra.mxu0 0
    %84 = vmatprep.subr.bf16.mxu0 0
    %85 = vmatpush1.bf16.msra.mxu0 0
    %86 = vmatprep.subr.bf16.mxu0 0
    %87 = vmatpush1.bf16.msra.mxu0 0
    %88 = vmatprep.subr.bf16.mxu0 0
    %89 = vmatpush1.bf16.msra.mxu0 0
    %90 = vmatprep.subr.bf16.mxu0 0
    %91 = vmatpush1.bf16.msra.mxu0 0
    %92 = vmatprep.subr.bf16.mxu0 0
    %93 = vmatpush1.bf16.msra.mxu0 0
    %94 = vmatprep.subr.bf16.mxu0 0
    %95 = vmatpush1.bf16.msra.mxu0 0
    %96 = vmatprep.subr.bf16.mxu0 0
    %97 = vmatpush1.bf16.msra.mxu0 0
    %98 = vmatprep.subr.bf16.mxu0 0
    %99 = vmatpush1.bf16.msra.mxu0 0
    %100 = vmatprep.mubr.bf16.mxu0 0
    %101 = vmatmul.mubr.bf16.gmra.mrb[0].mxu0 %v66
    %v102 = vpop.f32.mrb[0].mxu0
    %v103 = vadd.f32 0.0, %v102
    %v104 = vpop.f32.mrb[0].mxu0
    %v105 = vpop.f32.mrb[0].mxu0
    %v106 = vadd.f32 0.0, %v105
    %v107 = vpop.f32.mrb[0].mxu0
    %108 = vdwg.mxu0
    %v109 = vpack.c.bf16 %v106, %v103
    %v111 = vunpack.c.l.b16 %v109
    %v112 = vunpack.c.h.b16 %v109
    %v113 = vpack.c.b16 %v111, %v111
    %v114 = vpack.c.b16 %v112, %v112
    %117 = vst [vmem:[#allocation7] sm:$0xf] %v113
    %118 = vst [vmem:[#allocation7 + $0x4] sm:$0xf] %v114
    // Predicated region
    $region18: #{multi_head_autocasting_score_packed.1} parent=1 // pred_check
      _
    $region19: #{multi_head_autocasting_score_packed.1} parent=1 // pred_check_branch
      %120 = sbr.rel (0) target = $region21
    $region20: #{multi_head_autocasting_score_packed.1} parent=1 // pred_region
      %s122 = ssub.s32 128, 128
      %123 = vsyncadd [#allocation4], %s122
      %s124 = sshll.u32 [#allocation7], 4
      %s125 = int_to_ptr.vmem [resolvable:$true] %s124
      %130 = dma.vmem_to_hbm [thread:$0]  %s125, 128, %s2, [#allocation4], 64, 64, 4
    $region21: #{multi_head_autocasting_score_packed.1} parent=1 // pred_fallthru
      _
    // Predicated region
    $region22: #{multi_head_autocasting_score_packed.1} parent=1 // pred_check
      _
    $region23: #{multi_head_autocasting_score_packed.1} parent=1 // pred_check_branch
      %132 = sbr.rel (0) target = $region25
    $region24: #{multi_head_autocasting_score_packed.1} parent=1 // pred_region
      %133 = dma.done [#allocation4], 128
    $region25: #{multi_head_autocasting_score_packed.1} parent=1 // pred_fallthru
      _
    %134 = vsyncpa [#allocation3], 1
    %135 = vsyncpa [#allocation6], 1
    %136 = vsyncpa [#allocation4], 1

</llo_original>
